<compile_context>
chip_gen: v5e
topology: v5e:2x2
jax: 0.10.0
libtpu: 0.0.40
codegen_flags: <defaults>
</compile_context>

<pallas_src>
import jax
import jax.numpy as jnp
from jax.experimental import pallas as pl
from jax.experimental.pallas import tpu as pltpu


def _round_up(n, m):
    return ((n + m - 1) // m) * m


def maverick_kernel(x_ref, w1_ref, b1_ref, w2_ref, b2_ref,
                    w3_ref, b3_ref, w4_ref, b4_ref, o_ref):
    # x_ref: (4, TB) -- batch on lanes, features on sublanes.
    x = x_ref[...]
    # Hoist the (tiny) weights/biases once per grid step.
    w1, b1 = w1_ref[...], b1_ref[...]   # (12, 4),  (12, 1)
    w2, b2 = w2_ref[...], b2_ref[...]   # (21, 12), (21, 1)
    w3, b3 = w3_ref[...], b3_ref[...]   # (10, 21), (10, 1)
    w4, b4 = w4_ref[...], b4_ref[...]   # (6, 10),  (6, 1)

    h1 = jnp.maximum(jnp.dot(w1, x, preferred_element_type=jnp.float32) + b1, 0.0)   # (12, TB)
    h2 = jnp.maximum(jnp.dot(w2, h1, preferred_element_type=jnp.float32) + b2, 0.0)  # (21, TB)
    h3 = jnp.maximum(jnp.dot(w3, h2, preferred_element_type=jnp.float32) + b3, 0.0)  # (10, TB)
    out = jnp.dot(w4, h3, preferred_element_type=jnp.float32) + b4                   # (6, TB)
    o_ref[...] = out.astype(o_ref.dtype)


def maverick_forward(x, params, *, tile_b=256):
    """x: (B, 4) float32.  params: PyTorch-layout weights (out,in), biases (out,)."""
    B, F = x.shape
    assert F == 4, F

    w1, b1 = params["w1"], params["b1"].reshape(-1, 1)
    w2, b2 = params["w2"], params["b2"].reshape(-1, 1)
    w3, b3 = params["w3"], params["b3"].reshape(-1, 1)
    w4, b4 = params["w4"], params["b4"].reshape(-1, 1)

    # Batch tile: multiple of 128 lanes; pad the batch up to a multiple of it.
    tb = min(tile_b, _round_up(B, 128))
    b_pad = _round_up(B, tb)

    # Lane-dense transposed input: (4, Bpad), batch on lanes.
    x_t = jnp.pad(x.T, ((0, 0), (0, b_pad - B)))

    def full_spec(shape):
        # Whole-array block; block index never changes -> stays resident in VMEM.
        return pl.BlockSpec(shape, lambda i: tuple(0 for _ in shape))

    n_params_bytes = 4 * (4 * 12 + 12 * 21 + 21 * 10 + 10 * 6 + 12 + 21 + 10 + 6)
    cost = pl.CostEstimate(
        flops=2 * 564 * b_pad,                      # 564 MACs per row
        transcendentals=0,
        bytes_accessed=4 * (4 + 6) * b_pad + n_params_bytes,
    )

    out_t = pl.pallas_call(
        maverick_kernel,
        out_shape=jax.ShapeDtypeStruct((6, b_pad), jnp.float32),
        grid=(b_pad // tb,),
        in_specs=[
            pl.BlockSpec((4, tb), lambda i: (0, i)),
            full_spec(w1.shape), full_spec(b1.shape),
            full_spec(w2.shape), full_spec(b2.shape),
            full_spec(w3.shape), full_spec(b3.shape),
            full_spec(w4.shape), full_spec(b4.shape),
        ],
        out_specs=pl.BlockSpec((6, tb), lambda i: (0, i)),
        compiler_params=pltpu.CompilerParams(
            dimension_semantics=("parallel",)),
        cost_estimate=cost,
    )(x_t, w1, b1, w2, b2, w3, b3, w4, b4)

    # Drop batch padding, return (B, 6) like the PyTorch module.
    return out_t[:, :B].T


def init_params(key):
    """PyTorch nn.Linear-style init: U(-1/sqrt(fan_in), +1/sqrt(fan_in)).
    Weights stored (out_features, in_features), biases (out_features,)."""
    dims = [(4, 12), (12, 21), (21, 10), (10, 6)]
    params = {}
    for idx, (fan_in, fan_out) in enumerate(dims, start=1):
        key, kw, kb = jax.random.split(key, 3)
        bound = 1.0 / jnp.sqrt(float(fan_in))
        params[f"w{idx}"] = jax.random.uniform(
            kw, (fan_out, fan_in), jnp.float32, minval=-bound, maxval=bound)
        params[f"b{idx}"] = jax.random.uniform(
            kb, (fan_out,), jnp.float32, minval=-bound, maxval=bound)
    return params


def reference_forward(x, params):
    h = jnp.maximum(x @ params["w1"].T + params["b1"], 0.0)
    h = jnp.maximum(h @ params["w2"].T + params["b2"], 0.0)
    h = jnp.maximum(h @ params["w3"].T + params["b3"], 0.0)
    return h @ params["w4"].T + params["b4"]


if __name__ == "__main__":
    key = jax.random.PRNGKey(0)
    kp, kx = jax.random.split(key)
    params = init_params(kp)

    # Batch chosen to exercise the batch grid (3 steps of 256) and padding
    # (600 -> 768).  Any B works; the wrapper pads/slices as needed.
    B = 600
    x = jax.random.normal(kx, (B, 4), dtype=jnp.float32)

    out = maverick_forward(x, params)
    out = jax.block_until_ready(out)

    ref = reference_forward(x, params)
    assert out.shape == (B, 6), out.shape
    assert jnp.allclose(out, ref, atol=1e-5, rtol=1e-5), "mismatch vs JAX reference"

    print("KERNEL_OK")
</pallas_src>

<mosaic_0001>
module attributes {stable_mosaic.version = 11 : i64} {
  func.func @maverick_kernel(%arg0: i32, %arg1: memref<4x256xf32, #tpu.memory_space<vmem>>, %arg2: memref<12x4xf32, #tpu.memory_space<vmem>>, %arg3: memref<12x1xf32, #tpu.memory_space<vmem>>, %arg4: memref<21x12xf32, #tpu.memory_space<vmem>>, %arg5: memref<21x1xf32, #tpu.memory_space<vmem>>, %arg6: memref<10x21xf32, #tpu.memory_space<vmem>>, %arg7: memref<10x1xf32, #tpu.memory_space<vmem>>, %arg8: memref<6x10xf32, #tpu.memory_space<vmem>>, %arg9: memref<6x1xf32, #tpu.memory_space<vmem>>, %arg10: memref<6x256xf32, #tpu.memory_space<vmem>>) attributes {dimension_semantics = [#tpu.dimension_semantics<parallel>], iteration_bounds = array<i64: 3>, scalar_prefetch = 0 : i64, scratch_operands = 0 : i64, tpu.core_type = #tpu.core_type<tc>, window_params = [{transform_indices = @transform_0, window_bounds = array<i64: 4, 256>}, {pipeline_mode = #tpu.pipeline_mode<synchronous>, transform_indices = @transform_1, window_bounds = array<i64: 12, 4>}, {pipeline_mode = #tpu.pipeline_mode<synchronous>, transform_indices = @transform_2, window_bounds = array<i64: 12, 1>}, {pipeline_mode = #tpu.pipeline_mode<synchronous>, transform_indices = @transform_3, window_bounds = array<i64: 21, 12>}, {pipeline_mode = #tpu.pipeline_mode<synchronous>, transform_indices = @transform_4, window_bounds = array<i64: 21, 1>}, {pipeline_mode = #tpu.pipeline_mode<synchronous>, transform_indices = @transform_5, window_bounds = array<i64: 10, 21>}, {pipeline_mode = #tpu.pipeline_mode<synchronous>, transform_indices = @transform_6, window_bounds = array<i64: 10, 1>}, {pipeline_mode = #tpu.pipeline_mode<synchronous>, transform_indices = @transform_7, window_bounds = array<i64: 6, 10>}, {pipeline_mode = #tpu.pipeline_mode<synchronous>, transform_indices = @transform_8, window_bounds = array<i64: 6, 1>}, {transform_indices = @transform_9, window_bounds = array<i64: 6, 256>}]} {
    %c0 = arith.constant 0 : index
    %c0_0 = arith.constant 0 : index
    %0 = vector.load %arg1[%c0, %c0_0] : memref<4x256xf32, #tpu.memory_space<vmem>>, vector<4x256xf32>
    %c0_1 = arith.constant 0 : index
    %c0_2 = arith.constant 0 : index
    %1 = vector.load %arg2[%c0_1, %c0_2] : memref<12x4xf32, #tpu.memory_space<vmem>>, vector<12x4xf32>
    %c0_3 = arith.constant 0 : index
    %c0_4 = arith.constant 0 : index
    %2 = vector.load %arg3[%c0_3, %c0_4] : memref<12x1xf32, #tpu.memory_space<vmem>>, vector<12x1xf32>
    %c0_5 = arith.constant 0 : index
    %c0_6 = arith.constant 0 : index
    %3 = vector.load %arg4[%c0_5, %c0_6] : memref<21x12xf32, #tpu.memory_space<vmem>>, vector<21x12xf32>
    %c0_7 = arith.constant 0 : index
    %c0_8 = arith.constant 0 : index
    %4 = vector.load %arg5[%c0_7, %c0_8] : memref<21x1xf32, #tpu.memory_space<vmem>>, vector<21x1xf32>
    %c0_9 = arith.constant 0 : index
    %c0_10 = arith.constant 0 : index
    %5 = vector.load %arg6[%c0_9, %c0_10] : memref<10x21xf32, #tpu.memory_space<vmem>>, vector<10x21xf32>
    %c0_11 = arith.constant 0 : index
    %c0_12 = arith.constant 0 : index
    %6 = vector.load %arg7[%c0_11, %c0_12] : memref<10x1xf32, #tpu.memory_space<vmem>>, vector<10x1xf32>
    %c0_13 = arith.constant 0 : index
    %c0_14 = arith.constant 0 : index
    %7 = vector.load %arg8[%c0_13, %c0_14] : memref<6x10xf32, #tpu.memory_space<vmem>>, vector<6x10xf32>
    %c0_15 = arith.constant 0 : index
    %c0_16 = arith.constant 0 : index
    %8 = vector.load %arg9[%c0_15, %c0_16] : memref<6x1xf32, #tpu.memory_space<vmem>>, vector<6x1xf32>
    %cst = arith.constant dense<0.000000e+00> : vector<12x256xf32>
    %9 = tpu.matmul %1, %0, %cst {dimension_numbers = #tpu.dot_dimension_numbers<[1], [0], [0], [1], [0, 0, 1, 1], [], []>} : vector<12x4xf32>, vector<4x256xf32>, vector<12x256xf32> -> vector<12x256xf32>
    %10 = vector.broadcast %2 : vector<12x1xf32> to vector<12x256xf32>
    %11 = arith.addf %9, %10 : vector<12x256xf32>
    %cst_17 = arith.constant 0.000000e+00 : f32
    %12 = vector.broadcast %cst_17 : f32 to vector<12x256xf32>
    %13 = arith.maximumf %11, %12 : vector<12x256xf32>
    %cst_18 = arith.constant dense<0.000000e+00> : vector<21x256xf32>
    %14 = tpu.matmul %3, %13, %cst_18 {dimension_numbers = #tpu.dot_dimension_numbers<[1], [0], [0], [1], [0, 0, 1, 1], [], []>} : vector<21x12xf32>, vector<12x256xf32>, vector<21x256xf32> -> vector<21x256xf32>
    %15 = vector.broadcast %4 : vector<21x1xf32> to vector<21x256xf32>
    %16 = arith.addf %14, %15 : vector<21x256xf32>
    %cst_19 = arith.constant 0.000000e+00 : f32
    %17 = vector.broadcast %cst_19 : f32 to vector<21x256xf32>
    %18 = arith.maximumf %16, %17 : vector<21x256xf32>
    %cst_20 = arith.constant dense<0.000000e+00> : vector<10x256xf32>
    %19 = tpu.matmul %5, %18, %cst_20 {dimension_numbers = #tpu.dot_dimension_numbers<[1], [0], [0], [1], [0, 0, 1, 1], [], []>} : vector<10x21xf32>, vector<21x256xf32>, vector<10x256xf32> -> vector<10x256xf32>
    %20 = vector.broadcast %6 : vector<10x1xf32> to vector<10x256xf32>
    %21 = arith.addf %19, %20 : vector<10x256xf32>
    %cst_21 = arith.constant 0.000000e+00 : f32
    %22 = vector.broadcast %cst_21 : f32 to vector<10x256xf32>
    %23 = arith.maximumf %21, %22 : vector<10x256xf32>
    %cst_22 = arith.constant dense<0.000000e+00> : vector<6x256xf32>
    %24 = tpu.matmul %7, %23, %cst_22 {dimension_numbers = #tpu.dot_dimension_numbers<[1], [0], [0], [1], [0, 0, 1, 1], [], []>} : vector<6x10xf32>, vector<10x256xf32>, vector<6x256xf32> -> vector<6x256xf32>
    %25 = vector.broadcast %8 : vector<6x1xf32> to vector<6x256xf32>
    %26 = arith.addf %24, %25 : vector<6x256xf32>
    %c0_23 = arith.constant 0 : index
    %c0_24 = arith.constant 0 : index
    %27 = vector.load %arg10[%c0_23, %c0_24] : memref<6x256xf32, #tpu.memory_space<vmem>>, vector<6x256xf32>
    tpu.vector_store %arg10[%c0_23, %c0_24], %26 {strides = array<i32>} : memref<6x256xf32, #tpu.memory_space<vmem>>, vector<6x256xf32>,
    return
  }
  func.func @transform_0(%arg0: i32) -> (i32, i32) {
    %c0_i32 = arith.constant 0 : i32
    %c0_i32_0 = arith.constant 0 : i32
    return %c0_i32, %arg0 : i32, i32
  }
  func.func @transform_1(%arg0: i32) -> (i32, i32) {
    %c0_i32 = arith.constant 0 : i32
    %c0_i32_0 = arith.constant 0 : i32
    %c0_i32_1 = arith.constant 0 : i32
    return %c0_i32, %c0_i32_0 : i32, i32
  }
  func.func @transform_2(%arg0: i32) -> (i32, i32) {
    %c0_i32 = arith.constant 0 : i32
    %c0_i32_0 = arith.constant 0 : i32
    %c0_i32_1 = arith.constant 0 : i32
    return %c0_i32, %c0_i32_0 : i32, i32
  }
  func.func @transform_3(%arg0: i32) -> (i32, i32) {
    %c0_i32 = arith.constant 0 : i32
    %c0_i32_0 = arith.constant 0 : i32
    %c0_i32_1 = arith.constant 0 : i32
    return %c0_i32, %c0_i32_0 : i32, i32
  }
  func.func @transform_4(%arg0: i32) -> (i32, i32) {
    %c0_i32 = arith.constant 0 : i32
    %c0_i32_0 = arith.constant 0 : i32
    %c0_i32_1 = arith.constant 0 : i32
    return %c0_i32, %c0_i32_0 : i32, i32
  }
  func.func @transform_5(%arg0: i32) -> (i32, i32) {
    %c0_i32 = arith.constant 0 : i32
    %c0_i32_0 = arith.constant 0 : i32
    %c0_i32_1 = arith.constant 0 : i32
    return %c0_i32, %c0_i32_0 : i32, i32
  }
  func.func @transform_6(%arg0: i32) -> (i32, i32) {
    %c0_i32 = arith.constant 0 : i32
    %c0_i32_0 = arith.constant 0 : i32
    %c0_i32_1 = arith.constant 0 : i32
    return %c0_i32, %c0_i32_0 : i32, i32
  }
  func.func @transform_7(%arg0: i32) -> (i32, i32) {
    %c0_i32 = arith.constant 0 : i32
    %c0_i32_0 = arith.constant 0 : i32
    %c0_i32_1 = arith.constant 0 : i32
    return %c0_i32, %c0_i32_0 : i32, i32
  }
  func.func @transform_8(%arg0: i32) -> (i32, i32) {
    %c0_i32 = arith.constant 0 : i32
    %c0_i32_0 = arith.constant 0 : i32
    %c0_i32_1 = arith.constant 0 : i32
    return %c0_i32, %c0_i32_0 : i32, i32
  }
  func.func @transform_9(%arg0: i32) -> (i32, i32) {
    %c0_i32 = arith.constant 0 : i32
    %c0_i32_0 = arith.constant 0 : i32
    return %c0_i32, %arg0 : i32, i32
  }
}

</mosaic_0001>

<llo_original>
// kernel: tpu_custom_call.1
$region0: #{tpu_custom_call.1}
  #allocation0 [shape = 'u32[]', space=smem, size = 0x4, offset = 0x4, fixed_abs, tag = 'smem constant byte address 0x4 - core index']
  #allocation1 [shape = 'u32[72,128]{1,0:T(1,128)}', space=vmem, size = 0x9000, scoped, tag = 'internal scratch']
  %s0 = inlined_call_operand.vmem [shape: f32[4,768], index: 0, kind: input, shape index: {}]
  %s1 = inlined_call_operand.vmem [shape: f32[12,4], index: 1, kind: input, shape index: {}]
  %s2 = inlined_call_operand.vmem [shape: f32[12,1], index: 2, kind: input, shape index: {}]
  %s3 = inlined_call_operand.vmem [shape: f32[21,12], index: 3, kind: input, shape index: {}]
  %s4 = inlined_call_operand.vmem [shape: f32[21,1], index: 4, kind: input, shape index: {}]
  %s5 = inlined_call_operand.vmem [shape: f32[10,21], index: 5, kind: input, shape index: {}]
  %s6 = inlined_call_operand.vmem [shape: f32[10,1], index: 6, kind: input, shape index: {}]
  %s7 = inlined_call_operand.vmem [shape: f32[6,10], index: 7, kind: input, shape index: {}]
  %s8 = inlined_call_operand.vmem [shape: f32[6,1], index: 8, kind: input, shape index: {}]
  %s9 = inlined_call_operand.hbm [shape: f32[6,768], index: 9, kind: output, shape index: {}]
  %s10 = sld [smem:[#allocation0]]
  $region69: #{tpu_custom_call.1} parent=0
    _
  %s12 = ssub.s32 1, %s10
  %s13 = scalar_select 0, %s12, %s10
  $region1: #{tpu_custom_call.1} parent=0
    #allocation2 [shape = 'u8[16384]{0}', space=vmem, size = 0x4000, scoped, tag = 'output window, operand 0']
    #allocation3 [shape = 's32[2]{0}', space=sflag, size = 0x8, scoped, tag = 'scoped memory for tpu_custom_call.1']
    %14 = vsyncpa [#allocation3], 0
    %s15 = scalar_lea.sflag [#allocation3], 1
    %16 = vsyncpa %s15, 0
    loop: start=0, step=1, limit=5
    $region2: #{tpu_custom_call.1} parent=1 // loop_pre_header
      _
    $region3: #{tpu_custom_call.1} parent=1 // loop_header
      %s18 = sphi 0, %s22
      %p19 = scmp.ge.s32.totalorder %s18, 5
      %s28 = sphi 0, %s30
      %s31 = sphi 0, %s28
      %s32 = sphi 0, %s31
      %s48 = sphi 0, %s32
      %s52 = sphi 0, %s52
      %s54 = sphi 0, %s52
      %s55 = sphi 0, %s54
      %s69 = sphi 0, %s55
      %s73 = sphi 0, %s73
      %s75 = sphi 0, %s73
      %s76 = sphi 0, %s75
      %s90 = sphi 0, %s76
      %s94 = sphi 0, %s94
      %s96 = sphi 0, %s94
      %s97 = sphi 0, %s96
      %s111 = sphi 0, %s97
      %s115 = sphi 0, %s115
      %s117 = sphi 0, %s115
      %s118 = sphi 0, %s117
      %s132 = sphi 0, %s118
      %s136 = sphi 0, %s136
      %s138 = sphi 0, %s136
      %s139 = sphi 0, %s138
      %s153 = sphi 0, %s139
      %s157 = sphi 0, %s157
      %s159 = sphi 0, %s157
      %s160 = sphi 0, %s159
      %s174 = sphi 0, %s160
      %s178 = sphi 0, %s178
      %s180 = sphi 0, %s178
      %s181 = sphi 0, %s180
      %s195 = sphi 0, %s181
      %s199 = sphi 0, %s199
      %s201 = sphi 0, %s199
      %s202 = sphi 0, %s201
      %s216 = sphi 0, %s202
      %s222 = sphi 0, %s224
      %s225 = sphi 0, %s222
      %s226 = sphi 0, %s225
      %s242 = sphi 0, %s226
    $region4: #{tpu_custom_call.1} parent=1 // loop_header_branch
      %21 = sbr.rel (%p19) target = $region8
    $region5: #{tpu_custom_call.1} parent=1 // loop_body
      %s23 = ssub.s32 %s18, 1
      %s24 = ssub.s32 %s18, 2
      %s25 = sadd.s32 %s18, 1
      %s26 = ssub.s32 %s18, %s25
      %p27 = scmp.eq.s32.totalorder %s26, 0
      %s29 = sadd.s32 %s28, 1
      %s30 = scalar_select %p27, %s28, %s29
      %p33 = pneg %p27
      %p34 = scmp.eq.s32.totalorder %s18, 2
      %p35 = por %p33, %p34
      %p36 = scmp.ne.s32.totalorder %s28, %s31
      %p37 = scmp.eq.s32.totalorder %s18, 0
      %p38 = por %p36, %p37
      %p39 = scmp.ne.s32.totalorder %s28, %s31
      %p40 = scmp.eq.s32.totalorder %s23, 2
      %p41 = por %p39, %p40
      %p42 = scmp.ne.s32.totalorder %s31, %s32
      %p43 = scmp.eq.s32.totalorder %s23, 0
      %p44 = por %p42, %p43
      %p45 = scmp.ne.s32.totalorder %s31, %s32
      %p46 = scmp.eq.s32.totalorder %s24, 2
      %p47 = por %p45, %p46
      %p49 = scmp.ne.s32.totalorder %s32, %s48
      %p50 = scmp.eq.s32.totalorder %s24, 0
      %p51 = por %p49, %p50
      %s53 = sadd.s32 %s52, 1
      %p56 = scmp.eq.s32.totalorder %s18, 2
      %p57 = scmp.ne.s32.totalorder %s52, %s54
      %p58 = scmp.eq.s32.totalorder %s18, 0
      %p59 = por %p57, %p58
      %p60 = scmp.ne.s32.totalorder %s52, %s54
      %p61 = scmp.eq.s32.totalorder %s23, 2
      %p62 = por %p60, %p61
      %p63 = scmp.ne.s32.totalorder %s54, %s55
      %p64 = scmp.eq.s32.totalorder %s23, 0
      %p65 = por %p63, %p64
      %p66 = scmp.ne.s32.totalorder %s54, %s55
      %p67 = scmp.eq.s32.totalorder %s24, 2
      %p68 = por %p66, %p67
      %p70 = scmp.ne.s32.totalorder %s55, %s69
      %p71 = scmp.eq.s32.totalorder %s24, 0
      %p72 = por %p70, %p71
      %s74 = sadd.s32 %s73, 1
      %p77 = scmp.eq.s32.totalorder %s18, 2
      %p78 = scmp.ne.s32.totalorder %s73, %s75
      %p79 = scmp.eq.s32.totalorder %s18, 0
      %p80 = por %p78, %p79
      %p81 = scmp.ne.s32.totalorder %s73, %s75
      %p82 = scmp.eq.s32.totalorder %s23, 2
      %p83 = por %p81, %p82
      %p84 = scmp.ne.s32.totalorder %s75, %s76
      %p85 = scmp.eq.s32.totalorder %s23, 0
      %p86 = por %p84, %p85
      %p87 = scmp.ne.s32.totalorder %s75, %s76
      %p88 = scmp.eq.s32.totalorder %s24, 2
      %p89 = por %p87, %p88
      %p91 = scmp.ne.s32.totalorder %s76, %s90
      %p92 = scmp.eq.s32.totalorder %s24, 0
      %p93 = por %p91, %p92
      %s95 = sadd.s32 %s94, 1
      %p98 = scmp.eq.s32.totalorder %s18, 2
      %p99 = scmp.ne.s32.totalorder %s94, %s96
      %p100 = scmp.eq.s32.totalorder %s18, 0
      %p101 = por %p99, %p100
      %p102 = scmp.ne.s32.totalorder %s94, %s96
      %p103 = scmp.eq.s32.totalorder %s23, 2
      %p104 = por %p102, %p103
      %p105 = scmp.ne.s32.totalorder %s96, %s97
      %p106 = scmp.eq.s32.totalorder %s23, 0
      %p107 = por %p105, %p106
      %p108 = scmp.ne.s32.totalorder %s96, %s97
      %p109 = scmp.eq.s32.totalorder %s24, 2
      %p110 = por %p108, %p109
      %p112 = scmp.ne.s32.totalorder %s97, %s111
      %p113 = scmp.eq.s32.totalorder %s24, 0
      %p114 = por %p112, %p113
      %s116 = sadd.s32 %s115, 1
      %p119 = scmp.eq.s32.totalorder %s18, 2
      %p120 = scmp.ne.s32.totalorder %s115, %s117
      %p121 = scmp.eq.s32.totalorder %s18, 0
      %p122 = por %p120, %p121
      %p123 = scmp.ne.s32.totalorder %s115, %s117
      %p124 = scmp.eq.s32.totalorder %s23, 2
      %p125 = por %p123, %p124
      %p126 = scmp.ne.s32.totalorder %s117, %s118
      %p127 = scmp.eq.s32.totalorder %s23, 0
      %p128 = por %p126, %p127
      %p129 = scmp.ne.s32.totalorder %s117, %s118
      %p130 = scmp.eq.s32.totalorder %s24, 2
      %p131 = por %p129, %p130
      %p133 = scmp.ne.s32.totalorder %s118, %s132
      %p134 = scmp.eq.s32.totalorder %s24, 0
      %p135 = por %p133, %p134
      %s137 = sadd.s32 %s136, 1
      %p140 = scmp.eq.s32.totalorder %s18, 2
      %p141 = scmp.ne.s32.totalorder %s136, %s138
      %p142 = scmp.eq.s32.totalorder %s18, 0
      %p143 = por %p141, %p142
      %p144 = scmp.ne.s32.totalorder %s136, %s138
      %p145 = scmp.eq.s32.totalorder %s23, 2
      %p146 = por %p144, %p145
      %p147 = scmp.ne.s32.totalorder %s138, %s139
      %p148 = scmp.eq.s32.totalorder %s23, 0
      %p149 = por %p147, %p148
      %p150 = scmp.ne.s32.totalorder %s138, %s139
      %p151 = scmp.eq.s32.totalorder %s24, 2
      %p152 = por %p150, %p151
      %p154 = scmp.ne.s32.totalorder %s139, %s153
      %p155 = scmp.eq.s32.totalorder %s24, 0
      %p156 = por %p154, %p155
      %s158 = sadd.s32 %s157, 1
      %p161 = scmp.eq.s32.totalorder %s18, 2
      %p162 = scmp.ne.s32.totalorder %s157, %s159
      %p163 = scmp.eq.s32.totalorder %s18, 0
      %p164 = por %p162, %p163
      %p165 = scmp.ne.s32.totalorder %s157, %s159
      %p166 = scmp.eq.s32.totalorder %s23, 2
      %p167 = por %p165, %p166
      %p168 = scmp.ne.s32.totalorder %s159, %s160
      %p169 = scmp.eq.s32.totalorder %s23, 0
      %p170 = por %p168, %p169
      %p171 = scmp.ne.s32.totalorder %s159, %s160
      %p172 = scmp.eq.s32.totalorder %s24, 2
      %p173 = por %p171, %p172
      %p175 = scmp.ne.s32.totalorder %s160, %s174
      %p176 = scmp.eq.s32.totalorder %s24, 0
      %p177 = por %p175, %p176
      %s179 = sadd.s32 %s178, 1
      %p182 = scmp.eq.s32.totalorder %s18, 2
      %p183 = scmp.ne.s32.totalorder %s178, %s180
      %p184 = scmp.eq.s32.totalorder %s18, 0
      %p185 = por %p183, %p184
      %p186 = scmp.ne.s32.totalorder %s178, %s180
      %p187 = scmp.eq.s32.totalorder %s23, 2
      %p188 = por %p186, %p187
      %p189 = scmp.ne.s32.totalorder %s180, %s181
      %p190 = scmp.eq.s32.totalorder %s23, 0
      %p191 = por %p189, %p190
      %p192 = scmp.ne.s32.totalorder %s180, %s181
      %p193 = scmp.eq.s32.totalorder %s24, 2
      %p194 = por %p192, %p193
      %p196 = scmp.ne.s32.totalorder %s181, %s195
      %p197 = scmp.eq.s32.totalorder %s24, 0
      %p198 = por %p196, %p197
      %s200 = sadd.s32 %s199, 1
      %p203 = scmp.eq.s32.totalorder %s18, 2
      %p204 = scmp.ne.s32.totalorder %s199, %s201
      %p205 = scmp.eq.s32.totalorder %s18, 0
      %p206 = por %p204, %p205
      %p207 = scmp.ne.s32.totalorder %s199, %s201
      %p208 = scmp.eq.s32.totalorder %s23, 2
      %p209 = por %p207, %p208
      %p210 = scmp.ne.s32.totalorder %s201, %s202
      %p211 = scmp.eq.s32.totalorder %s23, 0
      %p212 = por %p210, %p211
      %p213 = scmp.ne.s32.totalorder %s201, %s202
      %p214 = scmp.eq.s32.totalorder %s24, 2
      %p215 = por %p213, %p214
      %p217 = scmp.ne.s32.totalorder %s202, %s216
      %p218 = scmp.eq.s32.totalorder %s24, 0
      %p219 = por %p217, %p218
      %s220 = ssub.s32 %s18, %s25
      %p221 = scmp.eq.s32.totalorder %s220, 0
      %s223 = sadd.s32 %s222, 1
      %s224 = scalar_select %p221, %s222, %s223
      %p227 = pneg %p221
      %p228 = scmp.eq.s32.totalorder %s18, 2
      %p229 = por %p227, %p228
      %p230 = scmp.ne.s32.totalorder %s222, %s225
      %p231 = scmp.eq.s32.totalorder %s18, 0
      %p232 = por %p230, %p231
      %p233 = scmp.ne.s32.totalorder %s222, %s225
      %p234 = scmp.eq.s32.totalorder %s23, 2
      %p235 = por %p233, %p234
      %p236 = scmp.ne.s32.totalorder %s225, %s226
      %p237 = scmp.eq.s32.totalorder %s23, 0
      %p238 = por %p236, %p237
      %p239 = scmp.ne.s32.totalorder %s225, %s226
      %p240 = scmp.eq.s32.totalorder %s24, 2
      %p241 = por %p239, %p240
      %p243 = scmp.ne.s32.totalorder %s226, %s242
      %p244 = scmp.eq.s32.totalorder %s24, 0
      %p245 = por %p243, %p244
      %p246 = scmp.le.s32.totalorder 1, %s18
      %p247 = scmp.lt.s32.totalorder %s18, 4
      %p248 = pnand %p246, %p247
      %p249 = pneg %p248
      // Predicated region
      $region9: #{tpu_custom_call.1} parent=5 // pred_check
        _
      $region10: #{tpu_custom_call.1} parent=5 // pred_check_branch
        %251 = sbr.rel (%p248) target = $region12
      $region11: #{tpu_custom_call.1} parent=5 // pred_region
        %s252 = ssub.s32 %s18, 1
        // Predicated region
        $region13: #{tpu_custom_call.1} parent=11 // pred_check
          %p253 = pneg %p65
        $region14: #{tpu_custom_call.1} parent=11 // pred_check_branch
          %255 = sbr.rel (%p253) target = $region16
        $region15: #{tpu_custom_call.1} parent=11 // pred_region
          _
        $region16: #{tpu_custom_call.1} parent=11 // pred_fallthru
          _
        // Predicated region
        $region17: #{tpu_custom_call.1} parent=11 // pred_check
          %p256 = pneg %p86
        $region18: #{tpu_custom_call.1} parent=11 // pred_check_branch
          %258 = sbr.rel (%p256) target = $region20
        $region19: #{tpu_custom_call.1} parent=11 // pred_region
          _
        $region20: #{tpu_custom_call.1} parent=11 // pred_fallthru
          _
        // Predicated region
        $region21: #{tpu_custom_call.1} parent=11 // pred_check
          %p259 = pneg %p107
        $region22: #{tpu_custom_call.1} parent=11 // pred_check_branch
          %261 = sbr.rel (%p259) target = $region24
        $region23: #{tpu_custom_call.1} parent=11 // pred_region
          _
        $region24: #{tpu_custom_call.1} parent=11 // pred_fallthru
          _
        // Predicated region
        $region25: #{tpu_custom_call.1} parent=11 // pred_check
          %p262 = pneg %p128
        $region26: #{tpu_custom_call.1} parent=11 // pred_check_branch
          %264 = sbr.rel (%p262) target = $region28
        $region27: #{tpu_custom_call.1} parent=11 // pred_region
          _
        $region28: #{tpu_custom_call.1} parent=11 // pred_fallthru
          _
        // Predicated region
        $region29: #{tpu_custom_call.1} parent=11 // pred_check
          %p265 = pneg %p149
        $region30: #{tpu_custom_call.1} parent=11 // pred_check_branch
          %267 = sbr.rel (%p265) target = $region32
        $region31: #{tpu_custom_call.1} parent=11 // pred_region
          _
        $region32: #{tpu_custom_call.1} parent=11 // pred_fallthru
          _
        // Predicated region
        $region33: #{tpu_custom_call.1} parent=11 // pred_check
          %p268 = pneg %p170
        $region34: #{tpu_custom_call.1} parent=11 // pred_check_branch
          %270 = sbr.rel (%p268) target = $region36
        $region35: #{tpu_custom_call.1} parent=11 // pred_region
          _
        $region36: #{tpu_custom_call.1} parent=11 // pred_fallthru
          _
        // Predicated region
        $region37: #{tpu_custom_call.1} parent=11 // pred_check
          %p271 = pneg %p191
        $region38: #{tpu_custom_call.1} parent=11 // pred_check_branch
          %273 = sbr.rel (%p271) target = $region40
        $region39: #{tpu_custom_call.1} parent=11 // pred_region
          _
        $region40: #{tpu_custom_call.1} parent=11 // pred_fallthru
          _
        // Predicated region
        $region41: #{tpu_custom_call.1} parent=11 // pred_check
          %p274 = pneg %p212
        $region42: #{tpu_custom_call.1} parent=11 // pred_check_branch
          %276 = sbr.rel (%p274) target = $region44
        $region43: #{tpu_custom_call.1} parent=11 // pred_region
          _
        $region44: #{tpu_custom_call.1} parent=11 // pred_fallthru
          _
      $region12: #{tpu_custom_call.1} parent=5 // pred_fallthru
        _
      %p277 = scmp.lt.s32.totalorder %s18, 3
      // Predicated region
      $region45: #{tpu_custom_call.1} parent=5 // pred_check
        %p278 = pneg %p277
      $region46: #{tpu_custom_call.1} parent=5 // pred_check_branch
        %280 = sbr.rel (%p278) target = $region48
      $region47: #{tpu_custom_call.1} parent=5 // pred_region
        // Predicated region
        $region49: #{tpu_custom_call.1} parent=47 // pred_check
          %p281 = pneg %p38
        $region50: #{tpu_custom_call.1} parent=47 // pred_check_branch
          %283 = sbr.rel (%p281) target = $region52
        $region51: #{tpu_custom_call.1} parent=47 // pred_region
          %s284 = smul.u32 2, %s18
          %p285 = scmp.lt.s32.totalorder %s284, 5
          %s286 = scalar_select %p285, %s284, 5
          %s287 = smul.addr %s286, 4
          %s288 = scalar_lea.vmem %s0, %s287
          %s289 = smul.u32 2, %s18
        $region52: #{tpu_custom_call.1} parent=47 // pred_fallthru
          _
      $region48: #{tpu_custom_call.1} parent=5 // pred_fallthru
        _
      %p290 = scmp.le.s32.totalorder 1, %s18
      %p291 = scmp.lt.s32.totalorder %s18, 4
      %p292 = pnand %p290, %p291
      %p293 = pneg %p292
      // Predicated region
      $region53: #{tpu_custom_call.1} parent=5 // pred_check
        _
      $region54: #{tpu_custom_call.1} parent=5 // pred_check_branch
        %295 = sbr.rel (%p292) target = $region56
      $region55: #{tpu_custom_call.1} parent=5 // pred_region
        %s296 = ssub.s32 %s18, 1
        %s297 = smul.u32 2, %s23
        %p298 = scmp.lt.s32.totalorder %s297, 5
        %s299 = scalar_select %p298, %s297, 5
        %s300 = smul.addr %s299, 4
        %s301 = scalar_lea.vmem %s0, %s300
        %p302 = pneg %p44
        %p303 = pneg %p41
        %p304 = pneg %p65
        %p305 = pneg %p62
        %p306 = pneg %p86
        %p307 = pneg %p83
        %p308 = pneg %p107
        %p309 = pneg %p104
        %p310 = pneg %p128
        %p311 = pneg %p125
        %p312 = pneg %p149
        %p313 = pneg %p146
        %p314 = pneg %p170
        %p315 = pneg %p167
        %p316 = pneg %p191
        %p317 = pneg %p188
        %p318 = pneg %p212
        %p319 = pneg %p209
        %p320 = pneg %p238
        %p321 = pneg %p235
        %s322 = sand.u32 %s225, 1
        %s323 = scalar_lea.sflag [#allocation3], %s322
        %s324 = sand.u32 %s225, 1
        %s325 = smul.addr %s324, 16
        %s326 = scalar_lea.vmem [#allocation2], %s325
        %s327 = smul.u32 2, %s23
        %p328 = scmp.lt.s32.totalorder %s327, 5
        %s329 = scalar_select %p328, %s327, 5
        %s330 = smul.addr %s329, 4
        %s331 = scalar_lea.vmem %s0, %s330
        %s332 = smul.u32 2, %s23
        %s333 = smul.u32 2, %s23
        %v334 = vld [vmem:[%s331] sm:$0xff]
        %v335 = vld [vmem:[%s1] sm:$0xff]
        %v336 = vld [vmem:[%s1 + $0x8] sm:$0xf]
        %v337 = vld [vmem:[%s2] sm:$0xff]
        %v338 = vld [vmem:[%s2 + $0x8] sm:$0xf]
        %v339 = vld [vmem:[%s3] sm:$0xff]
        %v340 = vld [vmem:[%s3 + $0x8] sm:$0xff]
        %v341 = vld [vmem:[%s3 + $0x10] sm:$0x1f]
        %v342 = vld [vmem:[%s4] sm:$0xff]
        %v343 = vld [vmem:[%s4 + $0x8] sm:$0xff]
        %v344 = vld [vmem:[%s4 + $0x10] sm:$0x1f]
        %v345 = vld [vmem:[%s5] sm:$0xff]
        %v346 = vld [vmem:[%s5 + $0x8] sm:$0x3]
        %v347 = vld [vmem:[%s6] sm:$0xff]
        %v348 = vld [vmem:[%s6 + $0x8] sm:$0x3]
        %v349 = vld [vmem:[%s7] sm:$0x3f]
        %v350 = vld [vmem:[%s8] sm:$0x3f]
        %352 = vset.pattern.permute.xlu0 0
        %353 = vperm.xlu0 %352, %v337
        %v354 = vpop.permute.xlu0 %353
        %357 = vset.pattern.permute.xlu0 0
        %358 = vperm.xlu0 %357, %v338
        %v359 = vpop.permute.xlu0 %358
        %362 = vst [vmem:[#allocation1] ss:$2 sm:$0xff] %v334
        %v363 = vld.sshfl [vmem:[#allocation1] sm:$0xff pattern:$0x75316420]
        %v364 = vld.sshfl [vmem:[#allocation1 + $0x8] sm:$0xff pattern:$0x75316420]
        %vm365 = vcmask 31744
        %v367 = vsel %vm365, %v335, 0
        %v370 = vsel %vm365, %v336, 0
        %vm372 = vcmask 1043456
        %v373 = vsel %vm372, %v363, 0
        %v375 = vsel %vm372, %v364, 0
        %377 = vmatpush.msra.mxu0 0.0
        %378 = vmatpush.msra.mxu0 0.0
        %379 = vmatpush.msra.mxu0 0.0
        %380 = vmatpush.msra.mxu0 0.0
        %381 = vmatpush.msra.mxu0 0.0
        %382 = vmatpush.msra.mxu0 0.0
        %383 = vmatpush.msra.mxu0 0.0
        %384 = vmatpush.msra.mxu0 0.0
        %385 = vmatpush.msra.mxu0 0.0
        %386 = vmatpush.msra.mxu0 0.0
        %387 = vmatpush.msra.mxu0 0.0
        %388 = vmatpush.msra.mxu0 0.0
        %389 = vmatpush.msra.mxu0 0.0
        %390 = vmatpush.msra.mxu0 0.0
        %391 = vmatpush.msra.mxu0 0.0
        %392 = vmatpush.msra.mxu0 %v373
        %393 = vmatmul.f32.gmra.mxu0 %v367
        %v394 = vpop.f32.mrf.mxu0
        %v395 = vadd.f32 %v354, %v394
        %396 = vmatmul.f32.gmra.mxu0 %v370
        %v397 = vpop.f32.mrf.mxu0
        %v398 = vadd.f32 %v359, %v397
        %399 = vdwg.mxu0
        %400 = vmatpush.msra.mxu0 0.0
        %401 = vmatpush.msra.mxu0 0.0
        %402 = vmatpush.msra.mxu0 0.0
        %403 = vmatpush.msra.mxu0 0.0
        %404 = vmatpush.msra.mxu0 0.0
        %405 = vmatpush.msra.mxu0 0.0
        %406 = vmatpush.msra.mxu0 0.0
        %407 = vmatpush.msra.mxu0 0.0
        %408 = vmatpush.msra.mxu0 0.0
        %409 = vmatpush.msra.mxu0 0.0
        %410 = vmatpush.msra.mxu0 0.0
        %411 = vmatpush.msra.mxu0 0.0
        %412 = vmatpush.msra.mxu0 0.0
        %413 = vmatpush.msra.mxu0 0.0
        %414 = vmatpush.msra.mxu0 0.0
        %415 = vmatpush.msra.mxu0 %v375
        %416 = vmatmul.f32.gmra.mxu0 %v367
        %v417 = vpop.f32.mrf.mxu0
        %v418 = vadd.f32 %v354, %v417
        %419 = vmatmul.f32.gmra.mxu0 %v370
        %v420 = vpop.f32.mrf.mxu0
        %v421 = vadd.f32 %v359, %v420
        %422 = vdwg.mxu0
        %v423 = vmax.f32 %v395, 0.0
        %v424 = vmax.f32 %v418, 0.0
        %v425 = vmax.f32 %v398, 0.0
        %v426 = vmax.f32 %v421, 0.0
        %428 = vset.pattern.permute.xlu0 0
        %429 = vperm.xlu0 %428, %v342
        %v430 = vpop.permute.xlu0 %429
        %433 = vset.pattern.permute.xlu0 0
        %434 = vperm.xlu0 %433, %v343
        %v435 = vpop.permute.xlu0 %434
        %438 = vset.pattern.permute.xlu0 0
        %439 = vperm.xlu0 %438, %v344
        %v440 = vpop.permute.xlu0 %439
        %vm442 = vcmask 97280
        %v444 = vsel %vm442, %v339, 0
        %v447 = vsel %vm442, %v340, 0
        %v450 = vsel %vm442, %v341, 0
        %v453 = vsel %vm372, %v425, 0
        %v456 = vsel %vm372, %v426, 0
        %458 = vmatpush.msra.mxu0 0.0
        %459 = vmatpush.msra.mxu0 0.0
        %460 = vmatpush.msra.mxu0 0.0
        %461 = vmatpush.msra.mxu0 0.0
        %462 = vmatpush.msra.mxu0 0.0
        %463 = vmatpush.msra.mxu0 0.0
        %464 = vmatpush.msra.mxu0 0.0
        %465 = vmatpush.msra.mxu0 0.0
        %466 = vmatpush.msra.mxu0 0.0
        %467 = vmatpush.msra.mxu0 0.0
        %468 = vmatpush.msra.mxu0 0.0
        %469 = vmatpush.msra.mxu0 0.0
        %470 = vmatpush.msra.mxu0 0.0
        %471 = vmatpush.msra.mxu0 0.0
        %472 = vmatpush.msra.mxu0 %v453
        %473 = vmatpush.msra.mxu0 %v423
        %474 = vmatmul.f32.gmra.mxu0 %v444
        %v475 = vpop.f32.mrf.mxu0
        %v476 = vadd.f32 %v430, %v475
        %477 = vmatmul.f32.gmra.mxu0 %v447
        %v478 = vpop.f32.mrf.mxu0
        %v479 = vadd.f32 %v435, %v478
        %480 = vmatmul.f32.gmra.mxu0 %v450
        %v481 = vpop.f32.mrf.mxu0
        %v482 = vadd.f32 %v440, %v481
        %483 = vdwg.mxu0
        %484 = vmatpush.msra.mxu0 0.0
        %485 = vmatpush.msra.mxu0 0.0
        %486 = vmatpush.msra.mxu0 0.0
        %487 = vmatpush.msra.mxu0 0.0
        %488 = vmatpush.msra.mxu0 0.0
        %489 = vmatpush.msra.mxu0 0.0
        %490 = vmatpush.msra.mxu0 0.0
        %491 = vmatpush.msra.mxu0 0.0
        %492 = vmatpush.msra.mxu0 0.0
        %493 = vmatpush.msra.mxu0 0.0
        %494 = vmatpush.msra.mxu0 0.0
        %495 = vmatpush.msra.mxu0 0.0
        %496 = vmatpush.msra.mxu0 0.0
        %497 = vmatpush.msra.mxu0 0.0
        %498 = vmatpush.msra.mxu0 %v456
        %499 = vmatpush.msra.mxu0 %v424
        %500 = vmatmul.f32.gmra.mxu0 %v444
        %v501 = vpop.f32.mrf.mxu0
        %v502 = vadd.f32 %v430, %v501
        %503 = vmatmul.f32.gmra.mxu0 %v447
        %v504 = vpop.f32.mrf.mxu0
        %v505 = vadd.f32 %v435, %v504
        %506 = vmatmul.f32.gmra.mxu0 %v450
        %v507 = vpop.f32.mrf.mxu0
        %v508 = vadd.f32 %v440, %v507
        %509 = vdwg.mxu0
        %v510 = vmax.f32 %v476, 0.0
        %v511 = vmax.f32 %v502, 0.0
        %v512 = vmax.f32 %v479, 0.0
        %v513 = vmax.f32 %v505, 0.0
        %v514 = vmax.f32 %v482, 0.0
        %v515 = vmax.f32 %v508, 0.0
        %517 = vset.pattern.permute.xlu0 0
        %518 = vperm.xlu0 %517, %v347
        %v519 = vpop.permute.xlu0 %518
        %522 = vset.pattern.permute.xlu0 0
        %523 = vperm.xlu0 %522, %v348
        %v524 = vpop.permute.xlu0 %523
        %vm526 = vcmask 171008
        %v528 = vsel %vm526, %v345, 0
        %v531 = vsel %vm526, %v346, 0
        %vm533 = vcmask 1044480
        %v535 = vsel %vm533, %v514, 0
        %v538 = vsel %vm533, %v515, 0
        %540 = vmatpush.msra.mxu0 0.0
        %541 = vmatpush.msra.mxu0 0.0
        %542 = vmatpush.msra.mxu0 0.0
        %543 = vmatpush.msra.mxu0 0.0
        %544 = vmatpush.msra.mxu0 0.0
        %545 = vmatpush.msra.mxu0 0.0
        %546 = vmatpush.msra.mxu0 0.0
        %547 = vmatpush.msra.mxu0 0.0
        %548 = vmatpush.msra.mxu0 0.0
        %549 = vmatpush.msra.mxu0 0.0
        %550 = vmatpush.msra.mxu0 0.0
        %551 = vmatpush.msra.mxu0 0.0
        %552 = vmatpush.msra.mxu0 0.0
        %553 = vmatpush.msra.mxu0 %v535
        %554 = vmatpush.msra.mxu0 %v512
        %555 = vmatpush.msra.mxu0 %v510
        %556 = vmatmul.f32.gmra.mxu0 %v528
        %v557 = vpop.f32.mrf.mxu0
        %v558 = vadd.f32 %v519, %v557
        %559 = vmatmul.f32.gmra.mxu0 %v531
        %v560 = vpop.f32.mrf.mxu0
        %v561 = vadd.f32 %v524, %v560
        %562 = vdwg.mxu0
        %563 = vmatpush.msra.mxu0 0.0
        %564 = vmatpush.msra.mxu0 0.0
        %565 = vmatpush.msra.mxu0 0.0
        %566 = vmatpush.msra.mxu0 0.0
        %567 = vmatpush.msra.mxu0 0.0
        %568 = vmatpush.msra.mxu0 0.0
        %569 = vmatpush.msra.mxu0 0.0
        %570 = vmatpush.msra.mxu0 0.0
        %571 = vmatpush.msra.mxu0 0.0
        %572 = vmatpush.msra.mxu0 0.0
        %573 = vmatpush.msra.mxu0 0.0
        %574 = vmatpush.msra.mxu0 0.0
        %575 = vmatpush.msra.mxu0 0.0
        %576 = vmatpush.msra.mxu0 %v538
        %577 = vmatpush.msra.mxu0 %v513
        %578 = vmatpush.msra.mxu0 %v511
        %579 = vmatmul.f32.gmra.mxu0 %v528
        %v580 = vpop.f32.mrf.mxu0
        %v581 = vadd.f32 %v519, %v580
        %582 = vmatmul.f32.gmra.mxu0 %v531
        %v583 = vpop.f32.mrf.mxu0
        %v584 = vadd.f32 %v524, %v583
        %585 = vdwg.mxu0
        %v586 = vmax.f32 %v558, 0.0
        %v587 = vmax.f32 %v581, 0.0
        %v588 = vmax.f32 %v561, 0.0
        %v589 = vmax.f32 %v584, 0.0
        %591 = vset.pattern.permute.xlu0 0
        %592 = vperm.xlu0 %591, %v350
        %v593 = vpop.permute.xlu0 %592
        %vm595 = vcmask 80896
        %v597 = vsel %vm595, %v349, 0
        %vm599 = vcmask 1041408
        %v601 = vsel %vm599, %v588, 0
        %v604 = vsel %vm599, %v589, 0
        %606 = vmatpush.msra.mxu0 0.0
        %607 = vmatpush.msra.mxu0 0.0
        %608 = vmatpush.msra.mxu0 0.0
        %609 = vmatpush.msra.mxu0 0.0
        %610 = vmatpush.msra.mxu0 0.0
        %611 = vmatpush.msra.mxu0 0.0
        %612 = vmatpush.msra.mxu0 0.0
        %613 = vmatpush.msra.mxu0 0.0
        %614 = vmatpush.msra.mxu0 0.0
        %615 = vmatpush.msra.mxu0 0.0
        %616 = vmatpush.msra.mxu0 0.0
        %617 = vmatpush.msra.mxu0 0.0
        %618 = vmatpush.msra.mxu0 0.0
        %619 = vmatpush.msra.mxu0 0.0
        %620 = vmatpush.msra.mxu0 %v601
        %621 = vmatpush.msra.mxu0 %v586
        %622 = vmatmul.f32.gmra.mxu0 %v597
        %v623 = vpop.f32.mrf.mxu0
        %v624 = vadd.f32 %v593, %v623
        %625 = vdwg.mxu0
        %626 = vmatpush.msra.mxu0 0.0
        %627 = vmatpush.msra.mxu0 0.0
        %628 = vmatpush.msra.mxu0 0.0
        %629 = vmatpush.msra.mxu0 0.0
        %630 = vmatpush.msra.mxu0 0.0
        %631 = vmatpush.msra.mxu0 0.0
        %632 = vmatpush.msra.mxu0 0.0
        %633 = vmatpush.msra.mxu0 0.0
        %634 = vmatpush.msra.mxu0 0.0
        %635 = vmatpush.msra.mxu0 0.0
        %636 = vmatpush.msra.mxu0 0.0
        %637 = vmatpush.msra.mxu0 0.0
        %638 = vmatpush.msra.mxu0 0.0
        %639 = vmatpush.msra.mxu0 0.0
        %640 = vmatpush.msra.mxu0 %v604
        %641 = vmatpush.msra.mxu0 %v587
        %642 = vmatmul.f32.gmra.mxu0 %v597
        %v643 = vpop.f32.mrf.mxu0
        %v644 = vadd.f32 %v593, %v643
        %645 = vdwg.mxu0
        %646 = vst [vmem:[%s326] sm:$0x3f] %v624
        %647 = vst [vmem:[%s326 + $0x8] sm:$0x3f] %v644
        %s648 = sand.u32 %s225, 1
        %s649 = scalar_lea.sflag [#allocation3], %s648
        %s650 = sand.u32 %s225, 1
        %s651 = smul.addr %s650, 16
        %s652 = scalar_lea.vmem [#allocation2], %s651
        // Predicated region
        $region57: #{tpu_custom_call.1} parent=55 // pred_check
          %p653 = pneg %p235
        $region58: #{tpu_custom_call.1} parent=55 // pred_check_branch
          %655 = sbr.rel (%p653) target = $region60
        $region59: #{tpu_custom_call.1} parent=55 // pred_region
          %s656 = smul.u32 2, %s23
          %658 = vsyncadd %s649, 0
          %s659 = smul.addr %s656, 8
          %s660 = scalar_lea.hbm %s9, %s659
          %s662 = sshll.u32 %s652, 4
          %s663 = int_to_ptr.vmem [resolvable:$true] %s662
          %s664 = sshll.u32 %s660, 4
          %s665 = int_to_ptr.hbm [resolvable:$true] %s664
          %667 = dma.vmem_to_hbm [thread:$0]  %s663, 256, %s665, %s649
        $region60: #{tpu_custom_call.1} parent=55 // pred_fallthru
          _
      $region56: #{tpu_custom_call.1} parent=5 // pred_fallthru
        _
      %p668 = scmp.le.s32.totalorder 2, %s18
      // Predicated region
      $region61: #{tpu_custom_call.1} parent=5 // pred_check
        %p669 = pneg %p668
      $region62: #{tpu_custom_call.1} parent=5 // pred_check_branch
        %671 = sbr.rel (%p669) target = $region64
      $region63: #{tpu_custom_call.1} parent=5 // pred_region
        %s672 = ssub.s32 %s18, 2
        // Predicated region
        $region65: #{tpu_custom_call.1} parent=63 // pred_check
          %p673 = pneg %p241
        $region66: #{tpu_custom_call.1} parent=63 // pred_check_branch
          %675 = sbr.rel (%p673) target = $region68
        $region67: #{tpu_custom_call.1} parent=63 // pred_region
          %s676 = sand.u32 %s226, 1
          %s677 = scalar_lea.sflag [#allocation3], %s676
          %s678 = sand.u32 %s226, 1
          %s679 = smul.addr %s678, 16
          %s680 = scalar_lea.vmem [#allocation2], %s679
          %682 = dma.done %s677, 256
        $region68: #{tpu_custom_call.1} parent=63 // pred_fallthru
          _
      $region64: #{tpu_custom_call.1} parent=5 // pred_fallthru
        _
    $region6: #{tpu_custom_call.1} parent=1 // loop_footer
      %s22 = sadd.s32 1, %s18
    $region7: #{tpu_custom_call.1} parent=1 // loop_footer_branch
      %17 = sbr.rel target = $region3
    $region8: #{tpu_custom_call.1} parent=1 // loop_exit
      _
    %683 = vsyncpa [#allocation3], 1
    %s684 = scalar_lea.sflag [#allocation3], 1
    %685 = vsyncpa %s684, 1

</llo_original>
